<compile_context>
chip_gen: v6e
topology: v6e:2x2x1
jax: 0.10.0
libtpu: 0.0.40
codegen_flags: <defaults>
</compile_context>

<pallas_src>
import functools

import jax
import jax.numpy as jnp
from jax import lax
from jax.experimental import pallas as pl
from jax.experimental.pallas import tpu as pltpu

SELU_ALPHA = 1.6732632423543772848170429916717
SELU_SCALE = 1.0507009873554804934193349852946
# TODO(synk): conv_activation / leaky_deconv / flow / upsample sources not
# provided; FlowNet convention LeakyReLU(negative_slope=0.1), flow = Conv2d
# (k=3,s=1,p=1, no act), upsample / leaky_deconv = ConvTranspose2d(k=4,s=2,p=1)
# (+LeakyReLU for leaky_deconv) assumed.
LEAKY_SLOPE = 0.1


def _round_up(x, m):
    return (x + m - 1) // m * m


# ----------------------------------------------------------------------------
# Pallas kernel: whole-K matmul with fused bias + activation (bf16 in, f32 acc)
# ----------------------------------------------------------------------------
def _matmul_bias_act_kernel(a_ref, b_ref, bias_ref, o_ref, *, act):
    y = jnp.dot(a_ref[...], b_ref[...], preferred_element_type=jnp.float32)
    y = y + bias_ref[...]                      # (tm, tn) + (1, tn), f32
    if act == "leaky_relu":
        y = jnp.where(y >= 0, y, LEAKY_SLOPE * y)
    elif act == "selu":
        y = SELU_SCALE * jnp.where(y > 0, y, SELU_ALPHA * (jnp.exp(y) - 1.0))
    # act == "none": identity
    o_ref[...] = y.astype(o_ref.dtype)


def matmul_bias_act(a, b, bias, act, n_valid):
    """Batched (G,M,K) @ (G,Kp,Np) + bias[1,Np] -> (G,M,n_valid) bf16.

    `b`/`bias` arrive pre-padded (Kp, Np multiples of 128); only `a` may need
    padding here.  Whole-K per tile: no reduction grid axis, no scratch.
    """
    G, M, K = a.shape
    Gb, Kp, Np = b.shape
    assert G == Gb and K <= Kp and Kp % 128 == 0 and Np % 128 == 0

    tm = min(256, _round_up(M, 8))
    Mp = _round_up(M, tm)
    tn = 256 if Np % 256 == 0 else 128
    if Mp != M or Kp != K:
        a = jnp.pad(a, ((0, 0), (0, Mp - M), (0, Kp - K)))

    grid = (G, Mp // tm, Np // tn)
    flops = 2 * G * Mp * Kp * Np
    transcendentals = G * Mp * Np if act == "selu" else 0
    bytes_accessed = (G * Mp * Kp * 2 + G * Kp * Np * 2 + Np * 4
                      + G * Mp * Np * 2)

    out = pl.pallas_call(
        functools.partial(_matmul_bias_act_kernel, act=act),
        out_shape=jax.ShapeDtypeStruct((G, Mp, Np), jnp.bfloat16),
        grid_spec=pltpu.PrefetchScalarGridSpec(
            num_scalar_prefetch=0,
            grid=grid,
            in_specs=[
                pl.BlockSpec((None, tm, Kp), lambda g, i, j: (g, i, 0)),
                pl.BlockSpec((None, Kp, tn), lambda g, i, j: (g, 0, j)),
                pl.BlockSpec((1, tn), lambda g, i, j: (0, j)),
            ],
            out_specs=pl.BlockSpec((None, tm, tn), lambda g, i, j: (g, i, j)),
        ),
        compiler_params=pltpu.CompilerParams(
            dimension_semantics=("parallel", "parallel", "parallel"),
            vmem_limit_bytes=48 * 1024 * 1024),
        cost_estimate=pl.CostEstimate(flops=flops,
                                      transcendentals=transcendentals,
                                      bytes_accessed=bytes_accessed),
    )(a, b, bias)
    return out[:, :M, :n_valid]


# ----------------------------------------------------------------------------
# Conv / deconv built on the Pallas matmul kernel (NHWC internal layout)
# ----------------------------------------------------------------------------
def conv2d(x, layer, k, stride, pad, cout, act):
    """NHWC Conv2d. x: (B,H,W,C) bf16; layer: {'w_mat':(Kp,Np) bf16, 'bias':(1,Np) f32}."""
    B, H, W, C = x.shape
    xp = jnp.pad(x, ((0, 0), (pad, pad), (pad, pad), (0, 0)))
    ho = (H + 2 * pad - k) // stride + 1
    wo = (W + 2 * pad - k) // stride + 1
    taps = []
    for di in range(k):
        for dj in range(k):
            taps.append(xp[:, di:di + ho * stride:stride,
                           dj:dj + wo * stride:stride, :])
    # TODO(synk): the im2col patch matrix is still materialized in HBM; fusing
    # the tap gather into the kernel input DMA would remove the k*k traffic
    # blow-up on the full-resolution 7x7 layers.
    a = jnp.concatenate(taps, axis=-1).reshape(1, B * ho * wo, k * k * C)
    y = matmul_bias_act(a, layer["w_mat"][None], layer["bias"], act, cout)
    return y[0].reshape(B, ho, wo, cout)


def deconv2d(x, layer, cout, act):
    """NHWC ConvTranspose2d(k=4, s=2, p=1) via sub-pixel decomposition.

    out[:, 2m+a, 2n+b, :] is a stride-1 2x2 conv of x with the (a,b) weight
    sub-grid; the 4 sub-convolutions run as ONE batched pallas_call (G=4).
    """
    B, H, W, C = x.shape
    xp = jnp.pad(x, ((0, 0), (1, 1), (1, 1), (0, 0)))
    mats = []
    for a_par in range(2):
        for b_par in range(2):
            taps = []
            for di in range(2):
                for dj in range(2):
                    taps.append(xp[:, a_par + di:a_par + di + H,
                                   b_par + dj:b_par + dj + W, :])
            mats.append(jnp.concatenate(taps, axis=-1).reshape(B * H * W, 4 * C))
    a = jnp.stack(mats, axis=0)                       # (4, M, 4C)
    y = matmul_bias_act(a, layer["w_mat"], layer["bias"], act, cout)  # (4,M,cout)
    y = y.reshape(2, 2, B, H, W, cout).transpose(2, 3, 0, 4, 1, 5)
    return y.reshape(B, 2 * H, 2 * W, cout)


# ----------------------------------------------------------------------------
# Parameter packing (done once, hoisted out of the per-layer path):
#   conv:   (Cout,Cin,k,k) -> (k*k*Cin, Cout) padded to (Kp, Np), bf16
#   deconv: (Cin,Cout,4,4) -> 4 sub-pixel (4*Cin, Cout) mats padded, bf16
# ----------------------------------------------------------------------------
def _pack_conv(w, b):
    cout, cin, k, _ = w.shape
    K = cin * k * k
    Kp, Np = _round_up(K, 128), _round_up(cout, 128)
    wm = w.transpose(2, 3, 1, 0).reshape(K, cout)            # (kh,kw,cin,cout)
    wm = jnp.pad(wm, ((0, Kp - K), (0, Np - cout))).astype(jnp.bfloat16)
    bias = jnp.pad(b, (0, Np - cout)).reshape(1, Np).astype(jnp.float32)
    return {"w_mat": wm, "bias": bias}


def _pack_deconv(w, b):
    cin, cout, k, _ = w.shape
    assert k == 4  # sub-pixel decomposition assumes k=4, s=2, p=1
    K = 4 * cin
    Kp, Np = _round_up(K, 128), _round_up(cout, 128)
    mats = []
    for a_par in range(2):
        trow = (3, 1) if a_par == 0 else (2, 0)
        for b_par in range(2):
            tcol = (3, 1) if b_par == 0 else (2, 0)
            taps = [w[:, :, trow[di], tcol[dj]]               # (cin, cout)
                    for di in range(2) for dj in range(2)]
            sub = jnp.stack(taps, axis=0).reshape(K, cout)    # tap-major rows
            mats.append(jnp.pad(sub, ((0, Kp - K), (0, Np - cout))))
    wm = jnp.stack(mats, axis=0).astype(jnp.bfloat16)         # (4, Kp, Np)
    bias = jnp.pad(b, (0, Np - cout)).reshape(1, Np).astype(jnp.float32)
    return {"w_mat": wm, "bias": bias}


def _prep_conv(key, cin, cout, k):
    fan_in = cin * k * k
    w = jax.random.normal(key, (cout, cin, k, k), jnp.float32) / jnp.sqrt(fan_in)
    b = jnp.zeros((cout,), jnp.float32)
    return _pack_conv(w, b)


def _prep_deconv(key, cin, cout, k=4):
    fan_in = cin * k * k
    w = jax.random.normal(key, (cin, cout, k, k), jnp.float32) / jnp.sqrt(fan_in)
    b = jnp.zeros((cout,), jnp.float32)
    return _pack_deconv(w, b)


def make_params(key, in_ch):
    keys = iter(jax.random.split(key, 40))
    p = {}
    # encoder
    p["conv1"] = _prep_conv(next(keys), in_ch, 64, 7)
    p["conv2"] = _prep_conv(next(keys), 64, 128, 5)
    p["conv3"] = _prep_conv(next(keys), 128, 256, 5)
    p["conv3_1"] = _prep_conv(next(keys), 256, 256, 3)
    p["conv4"] = _prep_conv(next(keys), 256, 512, 3)
    p["conv4_1"] = _prep_conv(next(keys), 512, 512, 3)
    p["conv5"] = _prep_conv(next(keys), 512, 512, 3)
    p["conv5_1"] = _prep_conv(next(keys), 512, 512, 3)
    p["conv6"] = _prep_conv(next(keys), 512, 1024, 3)
    p["conv6_1"] = _prep_conv(next(keys), 1024, 1024, 3)
    # decoder / refinement
    p["flow6"] = _prep_conv(next(keys), 1024, 2, 3)
    p["flow6_up"] = _prep_deconv(next(keys), 2, 2)
    p["deconv5"] = _prep_deconv(next(keys), 1024, 256)
    p["flow5"] = _prep_conv(next(keys), 770, 2, 3)
    p["flow5_up"] = _prep_deconv(next(keys), 2, 2)
    p["deconv4"] = _prep_deconv(next(keys), 770, 256)
    p["flow4"] = _prep_conv(next(keys), 770, 2, 3)
    p["flow4_up"] = _prep_deconv(next(keys), 2, 2)
    p["deconv3"] = _prep_deconv(next(keys), 770, 128)
    p["flow3"] = _prep_conv(next(keys), 386, 2, 3)
    p["flow3_up"] = _prep_deconv(next(keys), 2, 2)
    p["deconv2"] = _prep_deconv(next(keys), 386, 64)
    p["flow2"] = _prep_conv(next(keys), 194, 2, 3)
    p["flow2_up"] = _prep_deconv(next(keys), 2, 2)
    p["deconv1"] = _prep_deconv(next(keys), 194, 64)
    p["flow1"] = _prep_conv(next(keys), 130, 2, 3)
    p["flow1_up"] = _prep_deconv(next(keys), 2, 2)
    p["deconv0"] = _prep_deconv(next(keys), 130, 64)
    p["concat0_conv1"] = _prep_conv(next(keys), 70, 16, 7)
    p["concat0_conv2"] = _prep_conv(next(keys), 16, 16, 7)
    p["flow_12"] = _prep_conv(next(keys), 16, 2, 3)
    return p


# ----------------------------------------------------------------------------
# FlowNet forward (NCHW f32 in / out; NHWC bf16 internal)
# ----------------------------------------------------------------------------
def flownet_forward(params, img1_lr, img2_hr):
    x1 = jnp.transpose(img1_lr, (0, 2, 3, 1)).astype(jnp.bfloat16)
    x2 = jnp.transpose(img2_hr, (0, 2, 3, 1)).astype(jnp.bfloat16)
    x = jnp.concatenate([x1, x2], axis=-1)

    conv1 = conv2d(x, params["conv1"], 7, 2, 3, 64, "leaky_relu")
    conv2 = conv2d(conv1, params["conv2"], 5, 2, 2, 128, "leaky_relu")
    conv3 = conv2d(conv2, params["conv3"], 5, 2, 2, 256, "leaky_relu")
    conv3_1 = conv2d(conv3, params["conv3_1"], 3, 1, 1, 256, "leaky_relu")
    conv4 = conv2d(conv3_1, params["conv4"], 3, 2, 1, 512, "leaky_relu")
    conv4_1 = conv2d(conv4, params["conv4_1"], 3, 1, 1, 512, "leaky_relu")
    conv5 = conv2d(conv4_1, params["conv5"], 3, 2, 1, 512, "leaky_relu")
    conv5_1 = conv2d(conv5, params["conv5_1"], 3, 1, 1, 512, "leaky_relu")
    conv6 = conv2d(conv5_1, params["conv6"], 3, 2, 1, 1024, "leaky_relu")
    conv6_1 = conv2d(conv6, params["conv6_1"], 3, 1, 1, 1024, "leaky_relu")

    flow6 = conv2d(conv6_1, params["flow6"], 3, 1, 1, 2, "none")
    flow6_up = deconv2d(flow6, params["flow6_up"], 2, "none")
    deconv5 = deconv2d(conv6_1, params["deconv5"], 256, "leaky_relu")
    concat5 = jnp.concatenate([conv5_1, deconv5, flow6_up], axis=-1)

    flow5 = conv2d(concat5, params["flow5"], 3, 1, 1, 2, "none")
    flow5_up = deconv2d(flow5, params["flow5_up"], 2, "none")
    deconv4 = deconv2d(concat5, params["deconv4"], 256, "leaky_relu")
    concat4 = jnp.concatenate([conv4_1, deconv4, flow5_up], axis=-1)

    flow4 = conv2d(concat4, params["flow4"], 3, 1, 1, 2, "none")
    flow4_up = deconv2d(flow4, params["flow4_up"], 2, "none")
    deconv3 = deconv2d(concat4, params["deconv3"], 128, "leaky_relu")
    concat3 = jnp.concatenate([conv3_1, deconv3, flow4_up], axis=-1)

    flow3 = conv2d(concat3, params["flow3"], 3, 1, 1, 2, "none")
    flow3_up = deconv2d(flow3, params["flow3_up"], 2, "none")
    deconv2 = deconv2d(concat3, params["deconv2"], 64, "leaky_relu")
    concat2 = jnp.concatenate([conv2, deconv2, flow3_up], axis=-1)

    flow2 = conv2d(concat2, params["flow2"], 3, 1, 1, 2, "none")
    flow2_up = deconv2d(flow2, params["flow2_up"], 2, "none")
    deconv1 = deconv2d(concat2, params["deconv1"], 64, "leaky_relu")
    concat1 = jnp.concatenate([conv1, deconv1, flow2_up], axis=-1)

    flow1 = conv2d(concat1, params["flow1"], 3, 1, 1, 2, "none")
    flow1_up = deconv2d(flow1, params["flow1_up"], 2, "none")
    deconv0 = deconv2d(concat1, params["deconv0"], 64, "leaky_relu")
    concat0 = jnp.concatenate([x2, deconv0, flow1_up], axis=-1)

    concat0_conv1 = conv2d(concat0, params["concat0_conv1"], 7, 1, 3, 16, "selu")
    concat0_conv2 = conv2d(concat0_conv1, params["concat0_conv2"], 7, 1, 3, 16, "selu")
    flow_12 = conv2d(concat0_conv2, params["flow_12"], 3, 1, 1, 2, "none")

    def to_nchw(t):
        return jnp.transpose(t, (0, 3, 1, 2)).astype(jnp.float32)

    return {"flow_12_1": to_nchw(flow_12), "flow_12_2": to_nchw(flow1),
            "flow_12_3": to_nchw(flow2), "flow_12_4": to_nchw(flow3)}


# ----------------------------------------------------------------------------
# Lightweight numeric self-test of the Pallas conv / deconv building blocks
# against lax.conv_general_dilated (f32 reference on bf16-rounded operands).
# ----------------------------------------------------------------------------
def _leaky(y):
    return jnp.where(y >= 0, y, LEAKY_SLOPE * y)


def _self_test():
    key = jax.random.PRNGKey(42)
    kx, kw, kb, kx2, kw2, kb2 = jax.random.split(key, 6)

    # --- conv: cin=6, cout=13, k=3, stride=2, pad=1 -------------------------
    B, H, W, cin, cout, k, s, p = 2, 10, 12, 6, 13, 3, 2, 1
    x = jax.random.normal(kx, (B, H, W, cin), jnp.float32).astype(jnp.bfloat16)
    w = (jax.random.normal(kw, (cout, cin, k, k), jnp.float32)
         / jnp.sqrt(cin * k * k)).astype(jnp.bfloat16)
    b = jax.random.normal(kb, (cout,), jnp.float32) * 0.1
    y = conv2d(x, _pack_conv(w.astype(jnp.float32), b), k, s, p, cout,
               "leaky_relu").astype(jnp.float32)
    ref = lax.conv_general_dilated(
        jnp.transpose(x, (0, 3, 1, 2)).astype(jnp.float32),
        w.astype(jnp.float32), window_strides=(s, s),
        padding=[(p, p), (p, p)],
        dimension_numbers=("NCHW", "OIHW", "NCHW"))
    ref = _leaky(ref + b[None, :, None, None])
    ref = jnp.transpose(ref, (0, 2, 3, 1))
    assert jnp.allclose(y, ref, atol=5e-2, rtol=5e-2), "conv2d self-test failed"

    # --- deconv: cin=5, cout=9, k=4, s=2, p=1 -------------------------------
    cin, cout = 5, 9
    x = jax.random.normal(kx2, (B, H, W, cin), jnp.float32).astype(jnp.bfloat16)
    w = (jax.random.normal(kw2, (cin, cout, 4, 4), jnp.float32)
         / jnp.sqrt(cin * 16)).astype(jnp.bfloat16)
    b = jax.random.normal(kb2, (cout,), jnp.float32) * 0.1
    y = deconv2d(x, _pack_deconv(w.astype(jnp.float32), b), cout,
                 "leaky_relu").astype(jnp.float32)
    wf = jnp.flip(w, axis=(2, 3)).transpose(1, 0, 2, 3)      # (cout,cin,kh,kw)
    ref = lax.conv_general_dilated(
        jnp.transpose(x, (0, 3, 1, 2)).astype(jnp.float32),
        wf.astype(jnp.float32), window_strides=(1, 1),
        padding=[(2, 2), (2, 2)], lhs_dilation=(2, 2),
        dimension_numbers=("NCHW", "OIHW", "NCHW"))
    ref = _leaky(ref + b[None, :, None, None])
    ref = jnp.transpose(ref, (0, 2, 3, 1))
    assert jnp.allclose(y, ref, atol=5e-2, rtol=5e-2), "deconv2d self-test failed"


# ----------------------------------------------------------------------------
if __name__ == "__main__":
    _self_test()

    key = jax.random.PRNGKey(0)
    k_params, k_img1, k_img2 = jax.random.split(key, 3)

    # img2_HR must have 4 channels so that concat0 has 70 channels (4+64+2),
    # matching concat0_conv1(70, 16); in_ch = 4 + 4 = 8.  H=W=64 is the
    # smallest spatial size that survives the six stride-2 encoder stages.
    B, C, H, W = 1, 4, 64, 64
    img1_lr = jax.random.normal(k_img1, (B, C, H, W), jnp.float32)
    img2_hr = jax.random.normal(k_img2, (B, C, H, W), jnp.float32)

    params = make_params(k_params, in_ch=2 * C)

    fwd = jax.jit(flownet_forward)
    out = fwd(params, img1_lr, img2_hr)
    jax.block_until_ready(out)

    assert out["flow_12_1"].shape == (B, 2, H, W)
    assert out["flow_12_2"].shape == (B, 2, H // 2, W // 2)
    assert out["flow_12_3"].shape == (B, 2, H // 4, W // 4)
    assert out["flow_12_4"].shape == (B, 2, H // 8, W // 8)
    assert all(bool(jnp.all(jnp.isfinite(v))) for v in out.values())
    print("KERNEL_OK")
</pallas_src>

<mosaic_0001>
module attributes {stable_mosaic.version = 11 : i64} {
  func.func @_matmul_bias_act_kernel(%arg0: i32, %arg1: i32, %arg2: i32, %arg3: memref<1x64x128xbf16, #tpu.memory_space<vmem>>, %arg4: memref<1x128x128xbf16, #tpu.memory_space<vmem>>, %arg5: memref<1x128xf32, #tpu.memory_space<vmem>>, %arg6: memref<1x64x128xbf16, #tpu.memory_space<vmem>>) attributes {dimension_semantics = [#tpu.dimension_semantics<parallel>, #tpu.dimension_semantics<parallel>, #tpu.dimension_semantics<parallel>], iteration_bounds = array<i64: 1, 1, 1>, scalar_prefetch = 0 : i64, scratch_operands = 0 : i64, tpu.core_type = #tpu.core_type<tc>, window_params = [{transform_indices = @transform_0, window_bounds = array<i64: 1, 64, 128>}, {transform_indices = @transform_1, window_bounds = array<i64: 1, 128, 128>}, {transform_indices = @transform_2, window_bounds = array<i64: 1, 128>}, {transform_indices = @transform_3, window_bounds = array<i64: 1, 64, 128>}]} {
    %c0 = arith.constant 0 : index
    %c0_0 = arith.constant 0 : index
    %c0_1 = arith.constant 0 : index
    %0 = vector.load %arg3[%c0, %c0_0, %c0_1] : memref<1x64x128xbf16, #tpu.memory_space<vmem>>, vector<1x64x128xbf16>
    %1 = vector.shape_cast %0 : vector<1x64x128xbf16> to vector<64x128xbf16>
    %c0_2 = arith.constant 0 : index
    %c0_3 = arith.constant 0 : index
    %c0_4 = arith.constant 0 : index
    %2 = vector.load %arg4[%c0_2, %c0_3, %c0_4] : memref<1x128x128xbf16, #tpu.memory_space<vmem>>, vector<1x128x128xbf16>
    %3 = vector.shape_cast %2 : vector<1x128x128xbf16> to vector<128x128xbf16>
    %cst = arith.constant dense<0.000000e+00> : vector<64x128xf32>
    %4 = tpu.matmul %1, %3, %cst {dimension_numbers = #tpu.dot_dimension_numbers<[1], [0], [0], [1], [0, 0, 1, 1], [], []>} : vector<64x128xbf16>, vector<128x128xbf16>, vector<64x128xf32> -> vector<64x128xf32>
    %c0_5 = arith.constant 0 : index
    %c0_6 = arith.constant 0 : index
    %5 = vector.load %arg5[%c0_5, %c0_6] : memref<1x128xf32, #tpu.memory_space<vmem>>, vector<1x128xf32>
    %6 = vector.broadcast %5 : vector<1x128xf32> to vector<64x128xf32>
    %7 = arith.addf %4, %6 : vector<64x128xf32>
    %cst_7 = arith.constant 0.000000e+00 : f32
    %8 = vector.broadcast %cst_7 : f32 to vector<64x128xf32>
    %9 = arith.cmpf oge, %7, %8 : vector<64x128xf32>
    %cst_8 = arith.constant 1.000000e-01 : f32
    %10 = vector.broadcast %cst_8 : f32 to vector<64x128xf32>
    %11 = arith.mulf %10, %7 : vector<64x128xf32>
    %12 = arith.select %9, %7, %11 : vector<64x128xi1>, vector<64x128xf32>
    %13 = arith.truncf %12 : vector<64x128xf32> to vector<64x128xbf16>
    %c0_9 = arith.constant 0 : index
    %c0_10 = arith.constant 0 : index
    %c0_11 = arith.constant 0 : index
    %14 = vector.load %arg6[%c0_9, %c0_10, %c0_11] : memref<1x64x128xbf16, #tpu.memory_space<vmem>>, vector<1x64x128xbf16>
    %15 = vector.shape_cast %14 : vector<1x64x128xbf16> to vector<64x128xbf16>
    %16 = vector.shape_cast %13 : vector<64x128xbf16> to vector<1x64x128xbf16>
    tpu.vector_store %arg6[%c0_9, %c0_10, %c0_11], %16 {strides = array<i32>} : memref<1x64x128xbf16, #tpu.memory_space<vmem>>, vector<1x64x128xbf16>,
    return
  }
  func.func @transform_0(%arg0: i32, %arg1: i32, %arg2: i32) -> (i32, i32, i32) {
    %c0_i32 = arith.constant 0 : i32
    %c0_i32_0 = arith.constant 0 : i32
    return %arg0, %arg1, %c0_i32 : i32, i32, i32
  }
  func.func @transform_1(%arg0: i32, %arg1: i32, %arg2: i32) -> (i32, i32, i32) {
    %c0_i32 = arith.constant 0 : i32
    %c0_i32_0 = arith.constant 0 : i32
    return %arg0, %c0_i32, %arg2 : i32, i32, i32
  }
  func.func @transform_2(%arg0: i32, %arg1: i32, %arg2: i32) -> (i32, i32) {
    %c0_i32 = arith.constant 0 : i32
    %c0_i32_0 = arith.constant 0 : i32
    return %c0_i32, %arg2 : i32, i32
  }
  func.func @transform_3(%arg0: i32, %arg1: i32, %arg2: i32) -> (i32, i32, i32) {
    %c0_i32 = arith.constant 0 : i32
    return %arg0, %arg1, %arg2 : i32, i32, i32
  }
}

</mosaic_0001>

<llo_original>
// kernel: tpu_custom_call.1
$region0: #{tpu_custom_call.1}
  #allocation0 [shape = 'u32[]', space=smem, size = 0x4, offset = 0x4, fixed_abs, tag = 'smem constant byte address 0x4 - core index']
  #allocation1 [shape = 'u32[144,128]{1,0:T(1,128)}', space=vmem, size = 0x12000, scoped, tag = 'internal scratch']
  %s0 = inlined_call_operand.hbm [shape: bf16[1,64,128], index: 0, kind: input, shape index: {}]
  %s1 = inlined_call_operand.hbm [shape: bf16[1,128,128], index: 1, kind: input, shape index: {}]
  %s2 = inlined_call_operand.vmem [shape: f32[1,128], index: 2, kind: input, shape index: {}]
  %s3 = inlined_call_operand.hbm [shape: bf16[1,64,128], index: 3, kind: output, shape index: {}]
  %s4 = sld [smem:[#allocation0]]
  $region30: #{tpu_custom_call.1} parent=0
    _
  %s6 = ssub.s32 1, %s4
  %s7 = scalar_select 0, %s6, %s4
  $region1: #{tpu_custom_call.1} parent=0
    #allocation2 [shape = 'u8[16384]{0}', space=vmem, size = 0x4000, scoped, tag = 'input window, operand 0, single buffered']
    #allocation3 [shape = 's32[1]{0}', space=sflag, size = 0x4, scoped, tag = 'scoped memory for tpu_custom_call.1']
    #allocation4 [shape = 's32[1]{0}', space=sflag, size = 0x4, scoped, tag = 'scoped memory for tpu_custom_call.1']
    #allocation5 [shape = 'u8[32768]{0}', space=vmem, size = 0x8000, scoped, tag = 'input window, operand 1, single buffered']
    #allocation6 [shape = 's32[1]{0}', space=sflag, size = 0x4, scoped, tag = 'scoped memory for tpu_custom_call.1']
    #allocation7 [shape = 'u8[16384]{0}', space=vmem, size = 0x4000, scoped, tag = 'output window, operand 0, single buffered']
    %8 = vsyncpa [#allocation3], 0
    %9 = vsyncpa [#allocation6], 0
    %10 = vsyncpa [#allocation4], 0
    // Predicated region
    $region2: #{tpu_custom_call.1} parent=1 // pred_check
      _
    $region3: #{tpu_custom_call.1} parent=1 // pred_check_branch
      %12 = sbr.rel (0) target = $region5
    $region4: #{tpu_custom_call.1} parent=1 // pred_region
      %s14 = ssub.s32 512, 512
      %15 = vsyncadd [#allocation3], %s14
      %s16 = sshll.u32 [#allocation2], 4
      %s17 = int_to_ptr.vmem [resolvable:$true] %s16
      %22 = dma.hbm_to_vmem [thread:$0]  %s0, 512, %s17, [#allocation3], 64, 64, 4
    $region5: #{tpu_custom_call.1} parent=1 // pred_fallthru
      _
    // Predicated region
    $region6: #{tpu_custom_call.1} parent=1 // pred_check
      _
    $region7: #{tpu_custom_call.1} parent=1 // pred_check_branch
      %24 = sbr.rel (0) target = $region9
    $region8: #{tpu_custom_call.1} parent=1 // pred_region
      %s26 = ssub.s32 1024, 1024
      %27 = vsyncadd [#allocation6], %s26
      %s28 = sshll.u32 [#allocation5], 4
      %s29 = int_to_ptr.vmem [resolvable:$true] %s28
      %34 = dma.hbm_to_vmem [thread:$0]  %s1, 1024, %s29, [#allocation6], 64, 64, 4
    $region9: #{tpu_custom_call.1} parent=1 // pred_fallthru
      _
    // Predicated region
    $region10: #{tpu_custom_call.1} parent=1 // pred_check
      _
    $region11: #{tpu_custom_call.1} parent=1 // pred_check_branch
      %36 = sbr.rel (0) target = $region13
    $region12: #{tpu_custom_call.1} parent=1 // pred_region
      _
    $region13: #{tpu_custom_call.1} parent=1 // pred_fallthru
      _
    // Predicated region
    $region14: #{tpu_custom_call.1} parent=1 // pred_check
      _
    $region15: #{tpu_custom_call.1} parent=1 // pred_check_branch
      %38 = sbr.rel (0) target = $region17
    $region16: #{tpu_custom_call.1} parent=1 // pred_region
      %39 = dma.done [#allocation3], 512
    $region17: #{tpu_custom_call.1} parent=1 // pred_fallthru
      _
    // Predicated region
    $region18: #{tpu_custom_call.1} parent=1 // pred_check
      _
    $region19: #{tpu_custom_call.1} parent=1 // pred_check_branch
      %41 = sbr.rel (0) target = $region21
    $region20: #{tpu_custom_call.1} parent=1 // pred_region
      %42 = dma.done [#allocation6], 1024
    $region21: #{tpu_custom_call.1} parent=1 // pred_fallthru
      _
    %v44 = vld [vmem:[#allocation2] sm:$0xf]
    %v45 = vld [vmem:[#allocation2 + $0x4] sm:$0xf]
    %v46 = vld [vmem:[#allocation2 + $0x8] sm:$0xf]
    %v47 = vld [vmem:[#allocation2 + $0xc] sm:$0xf]
    %v48 = vld [vmem:[#allocation2 + $0x10] sm:$0xf]
    %v49 = vld [vmem:[#allocation2 + $0x14] sm:$0xf]
    %v50 = vld [vmem:[#allocation2 + $0x18] sm:$0xf]
    %v51 = vld [vmem:[#allocation2 + $0x1c] sm:$0xf]
    %v52 = vld [vmem:[#allocation5] sm:$0xf]
    %v53 = vld [vmem:[#allocation5 + $0x4] sm:$0xf]
    %v54 = vld [vmem:[#allocation5 + $0x8] sm:$0xf]
    %v55 = vld [vmem:[#allocation5 + $0xc] sm:$0xf]
    %v56 = vld [vmem:[#allocation5 + $0x10] sm:$0xf]
    %v57 = vld [vmem:[#allocation5 + $0x14] sm:$0xf]
    %v58 = vld [vmem:[#allocation5 + $0x18] sm:$0xf]
    %v59 = vld [vmem:[#allocation5 + $0x1c] sm:$0xf]
    %v60 = vld [vmem:[#allocation5 + $0x20] sm:$0xf]
    %v61 = vld [vmem:[#allocation5 + $0x24] sm:$0xf]
    %v62 = vld [vmem:[#allocation5 + $0x28] sm:$0xf]
    %v63 = vld [vmem:[#allocation5 + $0x2c] sm:$0xf]
    %v64 = vld [vmem:[#allocation5 + $0x30] sm:$0xf]
    %v65 = vld [vmem:[#allocation5 + $0x34] sm:$0xf]
    %v66 = vld [vmem:[#allocation5 + $0x38] sm:$0xf]
    %v67 = vld [vmem:[#allocation5 + $0x3c] sm:$0xf]
    %v68 = vld [vmem:[%s2] sm:$0x1]
    %v70 = vlaneseq
    %v71 = vshrl.u32 %v70, 7
    %v72 = vsub.s32 0, %v71
    %v73 = vrot.slane %v68, %v72
    %v83 = vunpack.c.l.b16 %v44
    %v84 = vunpack.c.l.b16 %v45
    %v85 = vunpack.c.l.b16 %v46
    %v86 = vunpack.c.l.b16 %v47
    %v87 = vunpack.c.l.b16 %v48
    %v88 = vunpack.c.l.b16 %v49
    %v89 = vunpack.c.l.b16 %v50
    %v90 = vunpack.c.l.b16 %v51
    %v91 = vpack.c.b16 %v84, %v83
    %v92 = vpack.c.b16 %v86, %v85
    %v93 = vpack.c.b16 %v88, %v87
    %v94 = vpack.c.b16 %v90, %v89
    %v115 = vunpack.c.l.b16 %v52
    %v116 = vunpack.c.l.b16 %v53
    %v117 = vunpack.c.l.b16 %v54
    %v118 = vunpack.c.l.b16 %v55
    %v119 = vunpack.c.l.b16 %v56
    %v120 = vunpack.c.l.b16 %v57
    %v121 = vunpack.c.l.b16 %v58
    %v122 = vunpack.c.l.b16 %v59
    %v123 = vunpack.c.l.b16 %v60
    %v124 = vunpack.c.l.b16 %v61
    %v125 = vunpack.c.l.b16 %v62
    %v126 = vunpack.c.l.b16 %v63
    %v127 = vunpack.c.l.b16 %v64
    %v128 = vunpack.c.l.b16 %v65
    %v129 = vunpack.c.l.b16 %v66
    %v130 = vunpack.c.l.b16 %v67
    %v131 = vpack.c.b16 %v116, %v115
    %v132 = vpack.c.b16 %v118, %v117
    %v133 = vpack.c.b16 %v120, %v119
    %v134 = vpack.c.b16 %v122, %v121
    %v135 = vpack.c.b16 %v124, %v123
    %v136 = vpack.c.b16 %v126, %v125
    %v137 = vpack.c.b16 %v128, %v127
    %v138 = vpack.c.b16 %v130, %v129
    %147 = vmatprep.subr.bf16.mxu0 0
    %148 = vmatpush1.bf16.msra.mxu0 %v138
    %149 = vmatprep.subr.bf16.mxu0 0
    %150 = vmatpush1.bf16.msra.mxu0 %v137
    %151 = vmatprep.subr.bf16.mxu0 0
    %152 = vmatpush1.bf16.msra.mxu0 %v136
    %153 = vmatprep.subr.bf16.mxu0 0
    %154 = vmatpush1.bf16.msra.mxu0 %v135
    %155 = vmatprep.subr.bf16.mxu0 0
    %156 = vmatpush1.bf16.msra.mxu0 %v134
    %157 = vmatprep.subr.bf16.mxu0 0
    %158 = vmatpush1.bf16.msra.mxu0 %v133
    %159 = vmatprep.subr.bf16.mxu0 0
    %160 = vmatpush1.bf16.msra.mxu0 %v132
    %161 = vmatprep.subr.bf16.mxu0 0
    %162 = vmatpush1.bf16.msra.mxu0 %v131
    %163 = vmatprep.subr.bf16.mxu0 0
    %164 = vmatpush2.bf16.msra.mxu0 0
    %165 = vmatprep.subr.bf16.mxu0 0
    %166 = vmatpush2.bf16.msra.mxu0 0
    %167 = vmatprep.subr.bf16.mxu0 0
    %168 = vmatpush2.bf16.msra.mxu0 0
    %169 = vmatprep.subr.bf16.mxu0 0
    %170 = vmatpush2.bf16.msra.mxu0 0
    %171 = vmatprep.subr.bf16.mxu0 0
    %172 = vmatpush2.bf16.msra.mxu0 0
    %173 = vmatprep.subr.bf16.mxu0 0
    %174 = vmatpush2.bf16.msra.mxu0 0
    %175 = vmatprep.subr.bf16.mxu0 0
    %176 = vmatpush2.bf16.msra.mxu0 0
    %177 = vmatprep.subr.bf16.mxu0 0
    %178 = vmatpush2.bf16.msra.mxu0 0
    %179 = vmatprep.mubr.bf16.mxu0 0
    %180 = vmatmul.mubr.bf16.gmra.mxu0 %v91
    %v181 = vpop.f32.mrf.mxu0
    %v182 = vadd.f32 %v73, %v181
    %v183 = vpop.f32.mrf.mxu0
    %v184 = vpop.f32.mrf.mxu0
    %v185 = vadd.f32 %v73, %v184
    %v186 = vpop.f32.mrf.mxu0
    %187 = vmatprep.mubr.bf16.mxu0 0
    %188 = vmatmul.mubr.bf16.gmra.mxu0 %v92
    %v189 = vpop.f32.mrf.mxu0
    %v190 = vadd.f32 %v73, %v189
    %v191 = vpop.f32.mrf.mxu0
    %v192 = vpop.f32.mrf.mxu0
    %v193 = vadd.f32 %v73, %v192
    %v194 = vpop.f32.mrf.mxu0
    %195 = vmatprep.mubr.bf16.mxu0 0
    %196 = vmatmul.mubr.bf16.gmra.mxu0 %v93
    %v197 = vpop.f32.mrf.mxu0
    %v198 = vadd.f32 %v73, %v197
    %v199 = vpop.f32.mrf.mxu0
    %v200 = vpop.f32.mrf.mxu0
    %v201 = vadd.f32 %v73, %v200
    %v202 = vpop.f32.mrf.mxu0
    %203 = vmatprep.mubr.bf16.mxu0 0
    %204 = vmatmul.mubr.bf16.gmra.mxu0 %v94
    %v205 = vpop.f32.mrf.mxu0
    %v206 = vadd.f32 %v73, %v205
    %v207 = vpop.f32.mrf.mxu0
    %v208 = vpop.f32.mrf.mxu0
    %v209 = vadd.f32 %v73, %v208
    %v210 = vpop.f32.mrf.mxu0
    %211 = vdwg.mxu0
    %vm212 = vcmp.ge.f32.partialorder %v182, 0.0
    %vm213 = vcmp.ge.f32.partialorder %v185, 0.0
    %vm214 = vcmp.ge.f32.partialorder %v190, 0.0
    %vm215 = vcmp.ge.f32.partialorder %v193, 0.0
    %vm216 = vcmp.ge.f32.partialorder %v198, 0.0
    %vm217 = vcmp.ge.f32.partialorder %v201, 0.0
    %vm218 = vcmp.ge.f32.partialorder %v206, 0.0
    %vm219 = vcmp.ge.f32.partialorder %v209, 0.0
    %v220 = vmul.f32 %v182, 0.1
    %v221 = vmul.f32 %v185, 0.1
    %v222 = vmul.f32 %v190, 0.1
    %v223 = vmul.f32 %v193, 0.1
    %v224 = vmul.f32 %v198, 0.1
    %v225 = vmul.f32 %v201, 0.1
    %v226 = vmul.f32 %v206, 0.1
    %v227 = vmul.f32 %v209, 0.1
    %v228 = vsel %vm212, %v182, %v220
    %v229 = vsel %vm213, %v185, %v221
    %v230 = vsel %vm214, %v190, %v222
    %v231 = vsel %vm215, %v193, %v223
    %v232 = vsel %vm216, %v198, %v224
    %v233 = vsel %vm217, %v201, %v225
    %v234 = vsel %vm218, %v206, %v226
    %v235 = vsel %vm219, %v209, %v227
    %v236 = vpack.c.bf16 %v229, %v228
    %v237 = vpack.c.bf16 %v231, %v230
    %v238 = vpack.c.bf16 %v233, %v232
    %v239 = vpack.c.bf16 %v235, %v234
    %v244 = vunpack.c.l.b16 %v236
    %v245 = vunpack.c.h.b16 %v236
    %v246 = vunpack.c.l.b16 %v237
    %v247 = vunpack.c.h.b16 %v237
    %v248 = vunpack.c.l.b16 %v238
    %v249 = vunpack.c.h.b16 %v238
    %v250 = vunpack.c.l.b16 %v239
    %v251 = vunpack.c.h.b16 %v239
    %v252 = vpack.c.b16 %v244, %v244
    %v253 = vpack.c.b16 %v245, %v245
    %v254 = vpack.c.b16 %v246, %v246
    %v255 = vpack.c.b16 %v247, %v247
    %v256 = vpack.c.b16 %v248, %v248
    %v257 = vpack.c.b16 %v249, %v249
    %v258 = vpack.c.b16 %v250, %v250
    %v259 = vpack.c.b16 %v251, %v251
    %268 = vst [vmem:[#allocation7] sm:$0xf] %v252
    %269 = vst [vmem:[#allocation7 + $0x4] sm:$0xf] %v253
    %270 = vst [vmem:[#allocation7 + $0x8] sm:$0xf] %v254
    %271 = vst [vmem:[#allocation7 + $0xc] sm:$0xf] %v255
    %272 = vst [vmem:[#allocation7 + $0x10] sm:$0xf] %v256
    %273 = vst [vmem:[#allocation7 + $0x14] sm:$0xf] %v257
    %274 = vst [vmem:[#allocation7 + $0x18] sm:$0xf] %v258
    %275 = vst [vmem:[#allocation7 + $0x1c] sm:$0xf] %v259
    // Predicated region
    $region22: #{tpu_custom_call.1} parent=1 // pred_check
      _
    $region23: #{tpu_custom_call.1} parent=1 // pred_check_branch
      %277 = sbr.rel (0) target = $region25
    $region24: #{tpu_custom_call.1} parent=1 // pred_region
      %s279 = ssub.s32 512, 512
      %280 = vsyncadd [#allocation4], %s279
      %s281 = sshll.u32 [#allocation7], 4
      %s282 = int_to_ptr.vmem [resolvable:$true] %s281
      %287 = dma.vmem_to_hbm [thread:$0]  %s282, 512, %s3, [#allocation4], 64, 64, 4
    $region25: #{tpu_custom_call.1} parent=1 // pred_fallthru
      _
    // Predicated region
    $region26: #{tpu_custom_call.1} parent=1 // pred_check
      _
    $region27: #{tpu_custom_call.1} parent=1 // pred_check_branch
      %289 = sbr.rel (0) target = $region29
    $region28: #{tpu_custom_call.1} parent=1 // pred_region
      %290 = dma.done [#allocation4], 512
    $region29: #{tpu_custom_call.1} parent=1 // pred_fallthru
      _
    %291 = vsyncpa [#allocation3], 1
    %292 = vsyncpa [#allocation6], 1
    %293 = vsyncpa [#allocation4], 1

</llo_original>
